<compile_context>
chip_gen: v7x
topology: tpu7x:2x2x1
jax: 0.10.0
libtpu: 0.0.40
codegen_flags: <defaults>
</compile_context>

<pallas_src>
import functools

import jax
import jax.numpy as jnp
from jax import lax
from jax.experimental import pallas as pl
from jax.experimental.pallas import tpu as pltpu


def _round_up(x: int, m: int) -> int:
    return ((x + m - 1) // m) * m


def _cdiv(a: int, b: int) -> int:
    return (a + b - 1) // b


def _unpool_onehot_kernel(idx_ref, h_ref, out_ref):
    # idx_ref: (1, M_pad) int32      -- same block for every grid point
    # h_ref:   (M_pad, TILE_D)       -- changes only with the feature axis
    # out_ref: (TILE_N, TILE_D)
    tile_n = out_ref.shape[0]
    m_pad = h_ref.shape[0]

    # Grid axis 1 is the (innermost) output-row axis.
    row0 = pl.program_id(1) * tile_n
    rows = lax.broadcasted_iota(jnp.int32, (tile_n, m_pad), 0) + row0
    onehot = (rows == idx_ref[...]).astype(h_ref.dtype)        # (TILE_N, M_pad)

    # MXU does the routing; f32 accumulation, exact copy of h rows.
    out_ref[...] = jnp.dot(
        onehot, h_ref[...],
        precision=lax.Precision.HIGHEST,
        preferred_element_type=jnp.float32,
    ).astype(out_ref.dtype)


@functools.partial(jax.jit, static_argnums=(0, 3, 4))
def unpool(node_nums: int, h: jax.Array, idx: jax.Array,
           tile_n: int = 256, tile_d: int = 512) -> jax.Array:
    """Pallas implementation of Unpool.forward(node_nums, h, idx)."""
    assert h.ndim == 2 and idx.ndim == 1 and idx.shape[0] == h.shape[0]
    m, d = h.shape

    if node_nums == 0 or d == 0 or m == 0:
        return jnp.zeros((node_nums, d), h.dtype)

    # ---- pooled dim M: pad to a 128-multiple (MXU contraction dim / lane
    # dim of the one-hot mask).  Padded idx entries are -1 -> never match.
    m_pad = _round_up(m, 128)
    h_in = h if m_pad == m else jnp.pad(h, ((0, m_pad - m), (0, 0)))
    idx_in = jnp.full((1, m_pad), -1, jnp.int32).at[0, :m].set(
        idx.astype(jnp.int32))

    # ---- tile selection (no padding of N or D: ragged edge blocks are
    # masked on store by Pallas).
    tile_d_eff = d if d <= tile_d else tile_d              # 128-multiple when tiled
    tile_n_eff = node_nums if node_nums <= tile_n else tile_n   # 8-multiple when tiled

    itemsize = jnp.dtype(h.dtype).itemsize

    def vmem_estimate(tn: int, td: int) -> int:
        return (2 * m_pad * td * itemsize        # h (double buffered)
                + 2 * tn * td * itemsize         # out (double buffered)
                + tn * m_pad * (4 + itemsize)    # iota + one-hot temporaries
                + tn * td * 4                    # f32 accumulator
                + 2 * m_pad * 4)                 # idx

    budget = 12 * 1024 * 1024  # fits v5e's 16 MiB scoped default with headroom
    while (tile_d_eff > 128 and d > tile_d_eff
           and vmem_estimate(tile_n_eff, tile_d_eff) > budget):
        tile_d_eff //= 2
    while (tile_n_eff > 8 and node_nums > tile_n_eff
           and vmem_estimate(tile_n_eff, tile_d_eff) > budget):
        tile_n_eff //= 2

    grid_d = _cdiv(d, tile_d_eff)
    grid_n = _cdiv(node_nums, tile_n_eff)
    # Megacore: if the grid would be 1x1, split the row axis in two so both
    # TensorCores get work (v7x has 2 TCs/chip).
    if grid_d == 1 and grid_n == 1 and node_nums >= 16:
        tile_n_eff = _round_up(_cdiv(node_nums, 2), 8)
        grid_n = _cdiv(node_nums, tile_n_eff)

    cost = pl.CostEstimate(
        flops=2 * node_nums * m_pad * d,
        transcendentals=0,
        bytes_accessed=itemsize * (m_pad * d + node_nums * d) + 4 * m_pad,
    )

    return pl.pallas_call(
        _unpool_onehot_kernel,
        out_shape=jax.ShapeDtypeStruct((node_nums, d), h.dtype),
        grid_spec=pltpu.PrefetchScalarGridSpec(
            num_scalar_prefetch=0,
            # Row axis innermost -> h block (0, j) is constant across
            # consecutive steps and its re-DMA is elided.
            grid=(grid_d, grid_n),
            in_specs=[
                # idx: one small (1, M_pad) block, identical for all steps.
                pl.BlockSpec((1, m_pad), lambda j, i: (0, 0)),
                # h: all pooled rows, feature tile j (outer axis only).
                pl.BlockSpec((m_pad, tile_d_eff), lambda j, i: (0, j)),
            ],
            out_specs=pl.BlockSpec((tile_n_eff, tile_d_eff),
                                   lambda j, i: (i, j)),
        ),
        compiler_params=pltpu.CompilerParams(
            dimension_semantics=("parallel", "parallel"),
            vmem_limit_bytes=32 * 1024 * 1024,
        ),
        cost_estimate=cost,
    )(idx_in, h_in)


if __name__ == "__main__":
    key = jax.random.PRNGKey(0)
    k_h1, k_i1, k_h2, k_i2, k_h3, k_i3 = jax.random.split(key, 6)

    # --- test 1: small shapes matching the module's typical use ------------
    node_nums1, m1, hidden1 = 16, 8, 32
    h1 = jax.random.normal(k_h1, (m1, hidden1), dtype=jnp.float32)
    idx1 = jax.random.permutation(k_i1, node_nums1)[:m1].astype(jnp.int32)
    out1 = jax.block_until_ready(unpool(node_nums1, h1, idx1))
    ref1 = jnp.zeros((node_nums1, hidden1), h1.dtype).at[idx1].set(h1)
    assert out1.shape == (node_nums1, hidden1) and out1.dtype == h1.dtype
    assert jnp.allclose(out1, ref1), "mismatch vs reference scatter (test 1)"

    # --- test 2: ragged output-row tiling (no padding / slicing) -----------
    node_nums2, m2, hidden2 = 300, 100, 200
    h2 = jax.random.normal(k_h2, (m2, hidden2), dtype=jnp.float32)
    idx2 = jax.random.permutation(k_i2, node_nums2)[:m2].astype(jnp.int32)
    out2 = jax.block_until_ready(unpool(node_nums2, h2, idx2))
    ref2 = jnp.zeros((node_nums2, hidden2), h2.dtype).at[idx2].set(h2)
    assert out2.shape == (node_nums2, hidden2)
    assert jnp.allclose(out2, ref2), "mismatch vs reference scatter (test 2)"

    # --- test 3: feature tiling + ragged edges on both grid axes -----------
    node_nums3, m3, hidden3 = 400, 64, 640
    h3 = jax.random.normal(k_h3, (m3, hidden3), dtype=jnp.float32)
    idx3 = jax.random.permutation(k_i3, node_nums3)[:m3].astype(jnp.int32)
    out3 = jax.block_until_ready(unpool(node_nums3, h3, idx3))
    ref3 = jnp.zeros((node_nums3, hidden3), h3.dtype).at[idx3].set(h3)
    assert out3.shape == (node_nums3, hidden3)
    assert jnp.allclose(out3, ref3), "mismatch vs reference scatter (test 3)"

    print("KERNEL_OK")
</pallas_src>

<mosaic_0001>
module attributes {stable_mosaic.version = 11 : i64} {
  func.func @_unpool_onehot_kernel(%arg0: i32, %arg1: i32, %arg2: memref<1x128xi32, #tpu.memory_space<vmem>>, %arg3: memref<128x32xf32, #tpu.memory_space<vmem>>, %arg4: memref<8x32xf32, #tpu.memory_space<vmem>>) attributes {dimension_semantics = [#tpu.dimension_semantics<parallel>, #tpu.dimension_semantics<parallel>], iteration_bounds = array<i64: 1, 2>, scalar_prefetch = 0 : i64, scratch_operands = 0 : i64, tpu.core_type = #tpu.core_type<tc>, window_params = [{pipeline_mode = #tpu.pipeline_mode<synchronous>, transform_indices = @transform_0, window_bounds = array<i64: 1, 128>}, {transform_indices = @transform_1, window_bounds = array<i64: 128, 32>}, {transform_indices = @transform_2, window_bounds = array<i64: 8, 32>}]} {
    %c8_i32 = arith.constant 8 : i32
    %0 = arith.muli %arg1, %c8_i32 : i32
    %1 = tpu.iota {dimensions = array<i32: 0>} : vector<8x128xi32>
    %2 = vector.broadcast %0 : i32 to vector<8x128xi32>
    %3 = arith.addi %1, %2 : vector<8x128xi32>
    %c0 = arith.constant 0 : index
    %c0_0 = arith.constant 0 : index
    %4 = vector.load %arg2[%c0, %c0_0] : memref<1x128xi32, #tpu.memory_space<vmem>>, vector<1x128xi32>
    %5 = vector.broadcast %4 : vector<1x128xi32> to vector<8x128xi32>
    %6 = arith.cmpi eq, %3, %5 : vector<8x128xi32>
    %7 = arith.extui %6 : vector<8x128xi1> to vector<8x128xi32>
    %8 = arith.sitofp %7 : vector<8x128xi32> to vector<8x128xf32>
    %c0_1 = arith.constant 0 : index
    %c0_2 = arith.constant 0 : index
    %9 = vector.load %arg3[%c0_1, %c0_2] : memref<128x32xf32, #tpu.memory_space<vmem>>, vector<128x32xf32>
    %cst = arith.constant dense<0.000000e+00> : vector<8x32xf32>
    %10 = tpu.matmul %8, %9, %cst {dimension_numbers = #tpu.dot_dimension_numbers<[1], [0], [0], [1], [0, 0, 1, 1], [], []>, precision = #tpu.contract_precision<fp32>} : vector<8x128xf32>, vector<128x32xf32>, vector<8x32xf32> -> vector<8x32xf32>
    %c0_3 = arith.constant 0 : index
    %c0_4 = arith.constant 0 : index
    %11 = vector.load %arg4[%c0_3, %c0_4] : memref<8x32xf32, #tpu.memory_space<vmem>>, vector<8x32xf32>
    tpu.vector_store %arg4[%c0_3, %c0_4], %10 {strides = array<i32>} : memref<8x32xf32, #tpu.memory_space<vmem>>, vector<8x32xf32>,
    return
  }
  func.func @transform_0(%arg0: i32, %arg1: i32) -> (i32, i32) {
    %c0_i32 = arith.constant 0 : i32
    %c0_i32_0 = arith.constant 0 : i32
    %c0_i32_1 = arith.constant 0 : i32
    return %c0_i32, %c0_i32_0 : i32, i32
  }
  func.func @transform_1(%arg0: i32, %arg1: i32) -> (i32, i32) {
    %c0_i32 = arith.constant 0 : i32
    %c0_i32_0 = arith.constant 0 : i32
    return %c0_i32, %arg0 : i32, i32
  }
  func.func @transform_2(%arg0: i32, %arg1: i32) -> (i32, i32) {
    %c0_i32 = arith.constant 0 : i32
    return %arg1, %arg0 : i32, i32
  }
}

</mosaic_0001>

<llo_original>
// kernel: unpool.1
$region0: #{unpool.1}
  #allocation0 [shape = 'u32[]', space=smem, size = 0x4, offset = 0x4, fixed_abs, tag = 'smem constant byte address 0x4 - core index']
  #allocation1 [shape = 'u32[144,128]{1,0:T(1,128)}', space=vmem, size = 0x12000, scoped, tag = 'internal scratch']
  %s0 = inlined_call_operand.vmem [shape: s32[1,128], index: 0, kind: input, shape index: {}]
  %s1 = inlined_call_operand.vmem [shape: f32[128,32], index: 1, kind: input, shape index: {}]
  %s2 = inlined_call_operand.hbm [shape: f32[16,32], index: 2, kind: output, shape index: {}]
  %s3 = sld [smem:[#allocation0]]
  $region41: #{unpool.1} parent=0
    _
  %s5 = ssub.s32 1, %s3
  %s6 = scalar_select 0, %s5, %s3
  $region1: #{unpool.1} parent=0
    #allocation2 [shape = 'u8[8192]{0}', space=vmem, size = 0x2000, scoped, tag = 'output window, operand 0']
    #allocation3 [shape = 's32[2]{0}', space=sflag, size = 0x8, scoped, tag = 'scoped memory for unpool.1']
    %7 = vsyncpa [#allocation3], 0
    %s8 = scalar_lea.sflag [#allocation3], 1
    %9 = vsyncpa %s8, 0
    loop: start=0, step=1, limit=4
    $region2: #{unpool.1} parent=1 // loop_pre_header
      _
    $region3: #{unpool.1} parent=1 // loop_header
      %s11 = sphi 0, %s15
      %p12 = scmp.ge.s32.totalorder %s11, 4
      %s18 = sphi 0, %s30
      %s19 = sphi 0, %s26
      %s20 = sphi 0, %s18
      %s21 = sphi 0, %s19
      %s22 = sphi 0, %s20
      %s23 = sphi 0, %s21
      %s31 = sphi 0, %s31
      %s33 = sphi 0, %s31
      %s34 = sphi 0, %s33
      %s48 = sphi 0, %s34
      %s54 = sphi 0, %s56
      %s57 = sphi 0, %s54
      %s58 = sphi 0, %s57
      %s74 = sphi 0, %s58
      %s82 = sphi 0, %s84
      %s85 = sphi 0, %s82
      %s86 = sphi 0, %s85
      %s102 = sphi 0, %s86
    $region4: #{unpool.1} parent=1 // loop_header_branch
      %14 = sbr.rel (%p12) target = $region8
    $region5: #{unpool.1} parent=1 // loop_body
      %s16 = ssub.s32 %s11, 1
      %s17 = ssub.s32 %s11, 2
      %s24 = sadd.s32 1, %s19
      %p25 = scmp.ge.s32.totalorder %s24, 2
      %s26 = scalar_select %p25, 0, %s24
      %s27 = sadd.s32 1, %s18
      %s28 = scalar_select %p25, %s27, %s18
      %p29 = scmp.ge.s32.totalorder %s28, 1
      %s30 = scalar_select %p29, 0, %s28
      %s32 = sadd.s32 %s31, 1
      %p35 = scmp.eq.s32.totalorder %s11, 1
      %p36 = scmp.ne.s32.totalorder %s31, %s33
      %p37 = scmp.eq.s32.totalorder %s11, 0
      %p38 = por %p36, %p37
      %p39 = scmp.ne.s32.totalorder %s31, %s33
      %p40 = scmp.eq.s32.totalorder %s16, 1
      %p41 = por %p39, %p40
      %p42 = scmp.ne.s32.totalorder %s33, %s34
      %p43 = scmp.eq.s32.totalorder %s16, 0
      %p44 = por %p42, %p43
      %p45 = scmp.ne.s32.totalorder %s33, %s34
      %p46 = scmp.eq.s32.totalorder %s17, 1
      %p47 = por %p45, %p46
      %p49 = scmp.ne.s32.totalorder %s34, %s48
      %p50 = scmp.eq.s32.totalorder %s17, 0
      %p51 = por %p49, %p50
      %s52 = ssub.s32 %s18, %s30
      %p53 = scmp.eq.s32.totalorder %s52, 0
      %s55 = sadd.s32 %s54, 1
      %s56 = scalar_select %p53, %s54, %s55
      %p59 = pneg %p53
      %p60 = scmp.eq.s32.totalorder %s11, 1
      %p61 = por %p59, %p60
      %p62 = scmp.ne.s32.totalorder %s54, %s57
      %p63 = scmp.eq.s32.totalorder %s11, 0
      %p64 = por %p62, %p63
      %p65 = scmp.ne.s32.totalorder %s54, %s57
      %p66 = scmp.eq.s32.totalorder %s16, 1
      %p67 = por %p65, %p66
      %p68 = scmp.ne.s32.totalorder %s57, %s58
      %p69 = scmp.eq.s32.totalorder %s16, 0
      %p70 = por %p68, %p69
      %p71 = scmp.ne.s32.totalorder %s57, %s58
      %p72 = scmp.eq.s32.totalorder %s17, 1
      %p73 = por %p71, %p72
      %p75 = scmp.ne.s32.totalorder %s58, %s74
      %p76 = scmp.eq.s32.totalorder %s17, 0
      %p77 = por %p75, %p76
      %s78 = ssub.s32 %s19, %s26
      %s79 = ssub.s32 %s18, %s30
      %s80 = sor.u32 %s78, %s79
      %p81 = scmp.eq.s32.totalorder %s80, 0
      %s83 = sadd.s32 %s82, 1
      %s84 = scalar_select %p81, %s82, %s83
      %p87 = pneg %p81
      %p88 = scmp.eq.s32.totalorder %s11, 1
      %p89 = por %p87, %p88
      %p90 = scmp.ne.s32.totalorder %s82, %s85
      %p91 = scmp.eq.s32.totalorder %s11, 0
      %p92 = por %p90, %p91
      %p93 = scmp.ne.s32.totalorder %s82, %s85
      %p94 = scmp.eq.s32.totalorder %s16, 1
      %p95 = por %p93, %p94
      %p96 = scmp.ne.s32.totalorder %s85, %s86
      %p97 = scmp.eq.s32.totalorder %s16, 0
      %p98 = por %p96, %p97
      %p99 = scmp.ne.s32.totalorder %s85, %s86
      %p100 = scmp.eq.s32.totalorder %s17, 1
      %p101 = por %p99, %p100
      %p103 = scmp.ne.s32.totalorder %s86, %s102
      %p104 = scmp.eq.s32.totalorder %s17, 0
      %p105 = por %p103, %p104
      %p106 = scmp.le.s32.totalorder 1, %s11
      %p107 = scmp.lt.s32.totalorder %s11, 3
      %p108 = pnand %p106, %p107
      %p109 = pneg %p108
      // Predicated region
      $region9: #{unpool.1} parent=5 // pred_check
        _
      $region10: #{unpool.1} parent=5 // pred_check_branch
        %111 = sbr.rel (%p108) target = $region12
      $region11: #{unpool.1} parent=5 // pred_region
        %s112 = ssub.s32 %s11, 1
        // Predicated region
        $region13: #{unpool.1} parent=11 // pred_check
          %p113 = pneg %p44
        $region14: #{unpool.1} parent=11 // pred_check_branch
          %115 = sbr.rel (%p113) target = $region16
        $region15: #{unpool.1} parent=11 // pred_region
          _
        $region16: #{unpool.1} parent=11 // pred_fallthru
          _
        // Predicated region
        $region17: #{unpool.1} parent=11 // pred_check
          %p116 = pneg %p70
        $region18: #{unpool.1} parent=11 // pred_check_branch
          %118 = sbr.rel (%p116) target = $region20
        $region19: #{unpool.1} parent=11 // pred_region
          %p119 = scmp.lt.s32.totalorder %s20, 0
          %s120 = scalar_select %p119, %s20, 0
          %s121 = smul.addr %s120, 8
          %s122 = scalar_lea.vmem %s1, %s121
        $region20: #{unpool.1} parent=11 // pred_fallthru
          _
      $region12: #{unpool.1} parent=5 // pred_fallthru
        _
      %p123 = scmp.lt.s32.totalorder %s11, 2
      // Predicated region
      $region21: #{unpool.1} parent=5 // pred_check
        %p124 = pneg %p123
      $region22: #{unpool.1} parent=5 // pred_check_branch
        %126 = sbr.rel (%p124) target = $region24
      $region23: #{unpool.1} parent=5 // pred_region
        _
      $region24: #{unpool.1} parent=5 // pred_fallthru
        _
      %p127 = scmp.le.s32.totalorder 1, %s11
      %p128 = scmp.lt.s32.totalorder %s11, 3
      %p129 = pnand %p127, %p128
      %p130 = pneg %p129
      // Predicated region
      $region25: #{unpool.1} parent=5 // pred_check
        _
      $region26: #{unpool.1} parent=5 // pred_check_branch
        %132 = sbr.rel (%p129) target = $region28
      $region27: #{unpool.1} parent=5 // pred_region
        %s133 = ssub.s32 %s11, 1
        %p134 = pneg %p44
        %p135 = pneg %p41
        %p136 = scmp.lt.s32.totalorder %s20, 0
        %s137 = scalar_select %p136, %s20, 0
        %s138 = smul.addr %s137, 8
        %s139 = scalar_lea.vmem %s1, %s138
        %p140 = pneg %p70
        %p141 = pneg %p67
        %p142 = pneg %p98
        %p143 = pneg %p95
        %s144 = sand.u32 %s85, 1
        %s145 = scalar_lea.sflag [#allocation3], %s144
        %s146 = sand.u32 %s85, 1
        %s147 = smul.addr %s146, 8
        %s148 = scalar_lea.vmem [#allocation2], %s147
        %p149 = scmp.lt.s32.totalorder %s20, 0
        %s150 = scalar_select %p149, %s20, 0
        %s151 = smul.addr %s150, 8
        %s152 = scalar_lea.vmem %s1, %s151
        %s153 = smul.u32 %s21, 8
        %v154 = vlaneseq
        %v155 = vshrl.u32 %v154, 7
        %v156 = vstv %s153
        %v157 = vadd.s32 %v155, %v156
        %v158 = vld [vmem:[%s0] sm:$0x1]
        %v159 = vlaneseq
        %v160 = vshrl.u32 %v159, 7
        %v161 = vsub.s32 0, %v160
        %v162 = vrot.slane %v158, %v161
        %vm163 = vcmp.eq.s32.totalorder %v157, %v162
        %v164 = vsel %vm163, 1, 0
        %v165 = vcvt.s32.f32 %v164
        %v166 = vld [vmem:[%s152] sm:$0xff]
        %v167 = vld [vmem:[%s152 + $0x8] sm:$0xff]
        %v168 = vld [vmem:[%s152 + $0x10] sm:$0xff]
        %v169 = vld [vmem:[%s152 + $0x18] sm:$0xff]
        %v170 = vld [vmem:[%s152 + $0x20] sm:$0xff]
        %v171 = vld [vmem:[%s152 + $0x28] sm:$0xff]
        %v172 = vld [vmem:[%s152 + $0x30] sm:$0xff]
        %v173 = vld [vmem:[%s152 + $0x38] sm:$0xff]
        %v174 = vld [vmem:[%s152 + $0x40] sm:$0xff]
        %v175 = vld [vmem:[%s152 + $0x48] sm:$0xff]
        %v176 = vld [vmem:[%s152 + $0x50] sm:$0xff]
        %v177 = vld [vmem:[%s152 + $0x58] sm:$0xff]
        %v178 = vld [vmem:[%s152 + $0x60] sm:$0xff]
        %v179 = vld [vmem:[%s152 + $0x68] sm:$0xff]
        %v180 = vld [vmem:[%s152 + $0x70] sm:$0xff]
        %v181 = vld [vmem:[%s152 + $0x78] sm:$0xff]
        %182 = vmatprep.subr.mxu0 0.0
        %v183 = vand.u32 %v166, 4294901760
        %184 = vmatpush1.msra.mxu0 %v183
        %185 = vmatprep.subr.mxu0 0.0
        %v186 = vand.u32 %v167, 4294901760
        %187 = vmatpush1.msra.mxu0 %v186
        %188 = vmatprep.subr.mxu0 0.0
        %v189 = vand.u32 %v168, 4294901760
        %190 = vmatpush1.msra.mxu0 %v189
        %191 = vmatprep.subr.mxu0 0.0
        %v192 = vand.u32 %v169, 4294901760
        %193 = vmatpush1.msra.mxu0 %v192
        %194 = vmatprep.subr.mxu0 0.0
        %v195 = vand.u32 %v170, 4294901760
        %196 = vmatpush1.msra.mxu0 %v195
        %197 = vmatprep.subr.mxu0 0.0
        %v198 = vand.u32 %v171, 4294901760
        %199 = vmatpush1.msra.mxu0 %v198
        %200 = vmatprep.subr.mxu0 0.0
        %v201 = vand.u32 %v172, 4294901760
        %202 = vmatpush1.msra.mxu0 %v201
        %203 = vmatprep.subr.mxu0 0.0
        %v204 = vand.u32 %v173, 4294901760
        %205 = vmatpush1.msra.mxu0 %v204
        %206 = vmatprep.subr.mxu0 0.0
        %v207 = vand.u32 %v174, 4294901760
        %208 = vmatpush1.msra.mxu0 %v207
        %209 = vmatprep.subr.mxu0 0.0
        %v210 = vand.u32 %v175, 4294901760
        %211 = vmatpush1.msra.mxu0 %v210
        %212 = vmatprep.subr.mxu0 0.0
        %v213 = vand.u32 %v176, 4294901760
        %214 = vmatpush1.msra.mxu0 %v213
        %215 = vmatprep.subr.mxu0 0.0
        %v216 = vand.u32 %v177, 4294901760
        %217 = vmatpush1.msra.mxu0 %v216
        %218 = vmatprep.subr.mxu0 0.0
        %v219 = vand.u32 %v178, 4294901760
        %220 = vmatpush1.msra.mxu0 %v219
        %221 = vmatprep.subr.mxu0 0.0
        %v222 = vand.u32 %v179, 4294901760
        %223 = vmatpush1.msra.mxu0 %v222
        %224 = vmatprep.subr.mxu0 0.0
        %v225 = vand.u32 %v180, 4294901760
        %226 = vmatpush1.msra.mxu0 %v225
        %227 = vmatprep.subr.mxu0 0.0
        %v228 = vand.u32 %v181, 4294901760
        %229 = vmatpush1.msra.mxu0 %v228
        %230 = vmatprep.subr.mxu0 0.0
        %231 = vmatpush1.msra.mxu0 0.0
        %232 = vmatprep.subr.mxu0 0.0
        %233 = vmatpush1.msra.mxu0 0.0
        %234 = vmatprep.subr.mxu0 0.0
        %235 = vmatpush1.msra.mxu0 0.0
        %236 = vmatprep.subr.mxu0 0.0
        %237 = vmatpush1.msra.mxu0 0.0
        %238 = vmatprep.subr.mxu0 0.0
        %239 = vmatpush1.msra.mxu0 0.0
        %240 = vmatprep.subr.mxu0 0.0
        %241 = vmatpush1.msra.mxu0 0.0
        %242 = vmatprep.subr.mxu0 0.0
        %243 = vmatpush1.msra.mxu0 0.0
        %244 = vmatprep.subr.mxu0 0.0
        %245 = vmatpush1.msra.mxu0 0.0
        %246 = vmatprep.subr.mxu0 0.0
        %247 = vmatpush1.msra.mxu0 0.0
        %248 = vmatprep.subr.mxu0 0.0
        %249 = vmatpush1.msra.mxu0 0.0
        %250 = vmatprep.subr.mxu0 0.0
        %251 = vmatpush1.msra.mxu0 0.0
        %252 = vmatprep.subr.mxu0 0.0
        %253 = vmatpush1.msra.mxu0 0.0
        %254 = vmatprep.subr.mxu0 0.0
        %255 = vmatpush1.msra.mxu0 0.0
        %256 = vmatprep.subr.mxu0 0.0
        %257 = vmatpush1.msra.mxu0 0.0
        %258 = vmatprep.subr.mxu0 0.0
        %259 = vmatpush1.msra.mxu0 0.0
        %260 = vmatprep.subr.mxu0 0.0
        %261 = vmatpush1.msra.mxu0 0.0
        %262 = vmatprep.mubr.f32.mxu0 0.0
        %v263 = vand.u32 %v165, 4294901760
        %v264 = vsub.f32 %v165, %v263
        %v265 = vand.u32 %v264, 4294901760
        %v266 = vsub.f32 %v264, %v265
        %v267 = vand.u32 %v266, 4294901760
        %268 = vmatmul.mubr.f32.gmra.mrb[0].mxu0 %v267
        %v269 = vpop.f32.mrb[0].mxu0
        %v270 = vadd.f32 0.0, %v269
        %v271 = vpop.f32.mrb[0].mxu0
        %272 = vdwg.mxu0
        %273 = vmatprep.subr.mxu0 0.0
        %v274 = vand.u32 %v166, 4294901760
        %v275 = vsub.f32 %v166, %v274
        %v276 = vand.u32 %v275, 4294901760
        %v277 = vsub.f32 %v275, %v276
        %v278 = vand.u32 %v277, 4294901760
        %279 = vmatpush1.msra.mxu0 %v278
        %280 = vmatprep.subr.mxu0 0.0
        %v281 = vand.u32 %v167, 4294901760
        %v282 = vsub.f32 %v167, %v281
        %v283 = vand.u32 %v282, 4294901760
        %v284 = vsub.f32 %v282, %v283
        %v285 = vand.u32 %v284, 4294901760
        %286 = vmatpush1.msra.mxu0 %v285
        %287 = vmatprep.subr.mxu0 0.0
        %v288 = vand.u32 %v168, 4294901760
        %v289 = vsub.f32 %v168, %v288
        %v290 = vand.u32 %v289, 4294901760
        %v291 = vsub.f32 %v289, %v290
        %v292 = vand.u32 %v291, 4294901760
        %293 = vmatpush1.msra.mxu0 %v292
        %294 = vmatprep.subr.mxu0 0.0
        %v295 = vand.u32 %v169, 4294901760
        %v296 = vsub.f32 %v169, %v295
        %v297 = vand.u32 %v296, 4294901760
        %v298 = vsub.f32 %v296, %v297
        %v299 = vand.u32 %v298, 4294901760
        %300 = vmatpush1.msra.mxu0 %v299
        %301 = vmatprep.subr.mxu0 0.0
        %v302 = vand.u32 %v170, 4294901760
        %v303 = vsub.f32 %v170, %v302
        %v304 = vand.u32 %v303, 4294901760
        %v305 = vsub.f32 %v303, %v304
        %v306 = vand.u32 %v305, 4294901760
        %307 = vmatpush1.msra.mxu0 %v306
        %308 = vmatprep.subr.mxu0 0.0
        %v309 = vand.u32 %v171, 4294901760
        %v310 = vsub.f32 %v171, %v309
        %v311 = vand.u32 %v310, 4294901760
        %v312 = vsub.f32 %v310, %v311
        %v313 = vand.u32 %v312, 4294901760
        %314 = vmatpush1.msra.mxu0 %v313
        %315 = vmatprep.subr.mxu0 0.0
        %v316 = vand.u32 %v172, 4294901760
        %v317 = vsub.f32 %v172, %v316
        %v318 = vand.u32 %v317, 4294901760
        %v319 = vsub.f32 %v317, %v318
        %v320 = vand.u32 %v319, 4294901760
        %321 = vmatpush1.msra.mxu0 %v320
        %322 = vmatprep.subr.mxu0 0.0
        %v323 = vand.u32 %v173, 4294901760
        %v324 = vsub.f32 %v173, %v323
        %v325 = vand.u32 %v324, 4294901760
        %v326 = vsub.f32 %v324, %v325
        %v327 = vand.u32 %v326, 4294901760
        %328 = vmatpush1.msra.mxu0 %v327
        %329 = vmatprep.subr.mxu0 0.0
        %v330 = vand.u32 %v174, 4294901760
        %v331 = vsub.f32 %v174, %v330
        %v332 = vand.u32 %v331, 4294901760
        %v333 = vsub.f32 %v331, %v332
        %v334 = vand.u32 %v333, 4294901760
        %335 = vmatpush1.msra.mxu0 %v334
        %336 = vmatprep.subr.mxu0 0.0
        %v337 = vand.u32 %v175, 4294901760
        %v338 = vsub.f32 %v175, %v337
        %v339 = vand.u32 %v338, 4294901760
        %v340 = vsub.f32 %v338, %v339
        %v341 = vand.u32 %v340, 4294901760
        %342 = vmatpush1.msra.mxu0 %v341
        %343 = vmatprep.subr.mxu0 0.0
        %v344 = vand.u32 %v176, 4294901760
        %v345 = vsub.f32 %v176, %v344
        %v346 = vand.u32 %v345, 4294901760
        %v347 = vsub.f32 %v345, %v346
        %v348 = vand.u32 %v347, 4294901760
        %349 = vmatpush1.msra.mxu0 %v348
        %350 = vmatprep.subr.mxu0 0.0
        %v351 = vand.u32 %v177, 4294901760
        %v352 = vsub.f32 %v177, %v351
        %v353 = vand.u32 %v352, 4294901760
        %v354 = vsub.f32 %v352, %v353
        %v355 = vand.u32 %v354, 4294901760
        %356 = vmatpush1.msra.mxu0 %v355
        %357 = vmatprep.subr.mxu0 0.0
        %v358 = vand.u32 %v178, 4294901760
        %v359 = vsub.f32 %v178, %v358
        %v360 = vand.u32 %v359, 4294901760
        %v361 = vsub.f32 %v359, %v360
        %v362 = vand.u32 %v361, 4294901760
        %363 = vmatpush1.msra.mxu0 %v362
        %364 = vmatprep.subr.mxu0 0.0
        %v365 = vand.u32 %v179, 4294901760
        %v366 = vsub.f32 %v179, %v365
        %v367 = vand.u32 %v366, 4294901760
        %v368 = vsub.f32 %v366, %v367
        %v369 = vand.u32 %v368, 4294901760
        %370 = vmatpush1.msra.mxu0 %v369
        %371 = vmatprep.subr.mxu0 0.0
        %v372 = vand.u32 %v180, 4294901760
        %v373 = vsub.f32 %v180, %v372
        %v374 = vand.u32 %v373, 4294901760
        %v375 = vsub.f32 %v373, %v374
        %v376 = vand.u32 %v375, 4294901760
        %377 = vmatpush1.msra.mxu0 %v376
        %378 = vmatprep.subr.mxu0 0.0
        %v379 = vand.u32 %v181, 4294901760
        %v380 = vsub.f32 %v181, %v379
        %v381 = vand.u32 %v380, 4294901760
        %v382 = vsub.f32 %v380, %v381
        %v383 = vand.u32 %v382, 4294901760
        %384 = vmatpush1.msra.mxu0 %v383
        %385 = vmatprep.subr.mxu0 0.0
        %386 = vmatpush1.msra.mxu0 0.0
        %387 = vmatprep.subr.mxu0 0.0
        %388 = vmatpush1.msra.mxu0 0.0
        %389 = vmatprep.subr.mxu0 0.0
        %390 = vmatpush1.msra.mxu0 0.0
        %391 = vmatprep.subr.mxu0 0.0
        %392 = vmatpush1.msra.mxu0 0.0
        %393 = vmatprep.subr.mxu0 0.0
        %394 = vmatpush1.msra.mxu0 0.0
        %395 = vmatprep.subr.mxu0 0.0
        %396 = vmatpush1.msra.mxu0 0.0
        %397 = vmatprep.subr.mxu0 0.0
        %398 = vmatpush1.msra.mxu0 0.0
        %399 = vmatprep.subr.mxu0 0.0
        %400 = vmatpush1.msra.mxu0 0.0
        %401 = vmatprep.subr.mxu0 0.0
        %402 = vmatpush1.msra.mxu0 0.0
        %403 = vmatprep.subr.mxu0 0.0
        %404 = vmatpush1.msra.mxu0 0.0
        %405 = vmatprep.subr.mxu0 0.0
        %406 = vmatpush1.msra.mxu0 0.0
        %407 = vmatprep.subr.mxu0 0.0
        %408 = vmatpush1.msra.mxu0 0.0
        %409 = vmatprep.subr.mxu0 0.0
        %410 = vmatpush1.msra.mxu0 0.0
        %411 = vmatprep.subr.mxu0 0.0
        %412 = vmatpush1.msra.mxu0 0.0
        %413 = vmatprep.subr.mxu0 0.0
        %414 = vmatpush1.msra.mxu0 0.0
        %415 = vmatprep.subr.mxu0 0.0
        %416 = vmatpush1.msra.mxu0 0.0
        %417 = vmatprep.mubr.f32.mxu0 0.0
        %v418 = vand.u32 %v165, 4294901760
        %419 = vmatmul.mubr.f32.gmra.mrb[0].mxu0 %v418
        %v420 = vpop.f32.mrb[0].mxu0
        %v421 = vadd.f32 %v270, %v420
        %v422 = vpop.f32.mrb[0].mxu0
        %423 = vdwg.mxu0
        %424 = vmatprep.subr.mxu0 0.0
        %v425 = vand.u32 %v166, 4294901760
        %v426 = vsub.f32 %v166, %v425
        %427 = vmatpush1.msra.mxu0 %v426
        %428 = vmatprep.subr.mxu0 0.0
        %v429 = vand.u32 %v167, 4294901760
        %v430 = vsub.f32 %v167, %v429
        %431 = vmatpush1.msra.mxu0 %v430
        %432 = vmatprep.subr.mxu0 0.0
        %v433 = vand.u32 %v168, 4294901760
        %v434 = vsub.f32 %v168, %v433
        %435 = vmatpush1.msra.mxu0 %v434
        %436 = vmatprep.subr.mxu0 0.0
        %v437 = vand.u32 %v169, 4294901760
        %v438 = vsub.f32 %v169, %v437
        %439 = vmatpush1.msra.mxu0 %v438
        %440 = vmatprep.subr.mxu0 0.0
        %v441 = vand.u32 %v170, 4294901760
        %v442 = vsub.f32 %v170, %v441
        %443 = vmatpush1.msra.mxu0 %v442
        %444 = vmatprep.subr.mxu0 0.0
        %v445 = vand.u32 %v171, 4294901760
        %v446 = vsub.f32 %v171, %v445
        %447 = vmatpush1.msra.mxu0 %v446
        %448 = vmatprep.subr.mxu0 0.0
        %v449 = vand.u32 %v172, 4294901760
        %v450 = vsub.f32 %v172, %v449
        %451 = vmatpush1.msra.mxu0 %v450
        %452 = vmatprep.subr.mxu0 0.0
        %v453 = vand.u32 %v173, 4294901760
        %v454 = vsub.f32 %v173, %v453
        %455 = vmatpush1.msra.mxu0 %v454
        %456 = vmatprep.subr.mxu0 0.0
        %v457 = vand.u32 %v174, 4294901760
        %v458 = vsub.f32 %v174, %v457
        %459 = vmatpush1.msra.mxu0 %v458
        %460 = vmatprep.subr.mxu0 0.0
        %v461 = vand.u32 %v175, 4294901760
        %v462 = vsub.f32 %v175, %v461
        %463 = vmatpush1.msra.mxu0 %v462
        %464 = vmatprep.subr.mxu0 0.0
        %v465 = vand.u32 %v176, 4294901760
        %v466 = vsub.f32 %v176, %v465
        %467 = vmatpush1.msra.mxu0 %v466
        %468 = vmatprep.subr.mxu0 0.0
        %v469 = vand.u32 %v177, 4294901760
        %v470 = vsub.f32 %v177, %v469
        %471 = vmatpush1.msra.mxu0 %v470
        %472 = vmatprep.subr.mxu0 0.0
        %v473 = vand.u32 %v178, 4294901760
        %v474 = vsub.f32 %v178, %v473
        %475 = vmatpush1.msra.mxu0 %v474
        %476 = vmatprep.subr.mxu0 0.0
        %v477 = vand.u32 %v179, 4294901760
        %v478 = vsub.f32 %v179, %v477
        %479 = vmatpush1.msra.mxu0 %v478
        %480 = vmatprep.subr.mxu0 0.0
        %v481 = vand.u32 %v180, 4294901760
        %v482 = vsub.f32 %v180, %v481
        %483 = vmatpush1.msra.mxu0 %v482
        %484 = vmatprep.subr.mxu0 0.0
        %v485 = vand.u32 %v181, 4294901760
        %v486 = vsub.f32 %v181, %v485
        %487 = vmatpush1.msra.mxu0 %v486
        %488 = vmatprep.subr.mxu0 0.0
        %489 = vmatpush1.msra.mxu0 0.0
        %490 = vmatprep.subr.mxu0 0.0
        %491 = vmatpush1.msra.mxu0 0.0
        %492 = vmatprep.subr.mxu0 0.0
        %493 = vmatpush1.msra.mxu0 0.0
        %494 = vmatprep.subr.mxu0 0.0
        %495 = vmatpush1.msra.mxu0 0.0
        %496 = vmatprep.subr.mxu0 0.0
        %497 = vmatpush1.msra.mxu0 0.0
        %498 = vmatprep.subr.mxu0 0.0
        %499 = vmatpush1.msra.mxu0 0.0
        %500 = vmatprep.subr.mxu0 0.0
        %501 = vmatpush1.msra.mxu0 0.0
        %502 = vmatprep.subr.mxu0 0.0
        %503 = vmatpush1.msra.mxu0 0.0
        %504 = vmatprep.subr.mxu0 0.0
        %505 = vmatpush1.msra.mxu0 0.0
        %506 = vmatprep.subr.mxu0 0.0
        %507 = vmatpush1.msra.mxu0 0.0
        %508 = vmatprep.subr.mxu0 0.0
        %509 = vmatpush1.msra.mxu0 0.0
        %510 = vmatprep.subr.mxu0 0.0
        %511 = vmatpush1.msra.mxu0 0.0
        %512 = vmatprep.subr.mxu0 0.0
        %513 = vmatpush1.msra.mxu0 0.0
        %514 = vmatprep.subr.mxu0 0.0
        %515 = vmatpush1.msra.mxu0 0.0
        %516 = vmatprep.subr.mxu0 0.0
        %517 = vmatpush1.msra.mxu0 0.0
        %518 = vmatprep.subr.mxu0 0.0
        %519 = vmatpush1.msra.mxu0 0.0
        %520 = vmatprep.mubr.f32.mxu0 0.0
        %v521 = vand.u32 %v165, 4294901760
        %v522 = vsub.f32 %v165, %v521
        %523 = vmatmul.mubr.f32.gmra.mrb[0].mxu0 %v522
        %v524 = vpop.f32.mrb[0].mxu0
        %v525 = vadd.f32 %v421, %v524
        %v526 = vpop.f32.mrb[0].mxu0
        %527 = vdwg.mxu0
        %528 = vmatprep.subr.mxu0 0.0
        %v529 = vand.u32 %v166, 4294901760
        %530 = vmatpush1.msra.mxu0 %v529
        %531 = vmatprep.subr.mxu0 0.0
        %v532 = vand.u32 %v167, 4294901760
        %533 = vmatpush1.msra.mxu0 %v532
        %534 = vmatprep.subr.mxu0 0.0
        %v535 = vand.u32 %v168, 4294901760
        %536 = vmatpush1.msra.mxu0 %v535
        %537 = vmatprep.subr.mxu0 0.0
        %v538 = vand.u32 %v169, 4294901760
        %539 = vmatpush1.msra.mxu0 %v538
        %540 = vmatprep.subr.mxu0 0.0
        %v541 = vand.u32 %v170, 4294901760
        %542 = vmatpush1.msra.mxu0 %v541
        %543 = vmatprep.subr.mxu0 0.0
        %v544 = vand.u32 %v171, 4294901760
        %545 = vmatpush1.msra.mxu0 %v544
        %546 = vmatprep.subr.mxu0 0.0
        %v547 = vand.u32 %v172, 4294901760
        %548 = vmatpush1.msra.mxu0 %v547
        %549 = vmatprep.subr.mxu0 0.0
        %v550 = vand.u32 %v173, 4294901760
        %551 = vmatpush1.msra.mxu0 %v550
        %552 = vmatprep.subr.mxu0 0.0
        %v553 = vand.u32 %v174, 4294901760
        %554 = vmatpush1.msra.mxu0 %v553
        %555 = vmatprep.subr.mxu0 0.0
        %v556 = vand.u32 %v175, 4294901760
        %557 = vmatpush1.msra.mxu0 %v556
        %558 = vmatprep.subr.mxu0 0.0
        %v559 = vand.u32 %v176, 4294901760
        %560 = vmatpush1.msra.mxu0 %v559
        %561 = vmatprep.subr.mxu0 0.0
        %v562 = vand.u32 %v177, 4294901760
        %563 = vmatpush1.msra.mxu0 %v562
        %564 = vmatprep.subr.mxu0 0.0
        %v565 = vand.u32 %v178, 4294901760
        %566 = vmatpush1.msra.mxu0 %v565
        %567 = vmatprep.subr.mxu0 0.0
        %v568 = vand.u32 %v179, 4294901760
        %569 = vmatpush1.msra.mxu0 %v568
        %570 = vmatprep.subr.mxu0 0.0
        %v571 = vand.u32 %v180, 4294901760
        %572 = vmatpush1.msra.mxu0 %v571
        %573 = vmatprep.subr.mxu0 0.0
        %v574 = vand.u32 %v181, 4294901760
        %575 = vmatpush1.msra.mxu0 %v574
        %576 = vmatprep.subr.mxu0 0.0
        %577 = vmatpush1.msra.mxu0 0.0
        %578 = vmatprep.subr.mxu0 0.0
        %579 = vmatpush1.msra.mxu0 0.0
        %580 = vmatprep.subr.mxu0 0.0
        %581 = vmatpush1.msra.mxu0 0.0
        %582 = vmatprep.subr.mxu0 0.0
        %583 = vmatpush1.msra.mxu0 0.0
        %584 = vmatprep.subr.mxu0 0.0
        %585 = vmatpush1.msra.mxu0 0.0
        %586 = vmatprep.subr.mxu0 0.0
        %587 = vmatpush1.msra.mxu0 0.0
        %588 = vmatprep.subr.mxu0 0.0
        %589 = vmatpush1.msra.mxu0 0.0
        %590 = vmatprep.subr.mxu0 0.0
        %591 = vmatpush1.msra.mxu0 0.0
        %592 = vmatprep.subr.mxu0 0.0
        %593 = vmatpush1.msra.mxu0 0.0
        %594 = vmatprep.subr.mxu0 0.0
        %595 = vmatpush1.msra.mxu0 0.0
        %596 = vmatprep.subr.mxu0 0.0
        %597 = vmatpush1.msra.mxu0 0.0
        %598 = vmatprep.subr.mxu0 0.0
        %599 = vmatpush1.msra.mxu0 0.0
        %600 = vmatprep.subr.mxu0 0.0
        %601 = vmatpush1.msra.mxu0 0.0
        %602 = vmatprep.subr.mxu0 0.0
        %603 = vmatpush1.msra.mxu0 0.0
        %604 = vmatprep.subr.mxu0 0.0
        %605 = vmatpush1.msra.mxu0 0.0
        %606 = vmatprep.subr.mxu0 0.0
        %607 = vmatpush1.msra.mxu0 0.0
        %608 = vmatprep.mubr.f32.mxu0 0.0
        %v609 = vand.u32 %v165, 4294901760
        %v610 = vsub.f32 %v165, %v609
        %v611 = vand.u32 %v610, 4294901760
        %612 = vmatmul.mubr.f32.gmra.mrb[0].mxu0 %v611
        %v613 = vpop.f32.mrb[0].mxu0
        %v614 = vadd.f32 %v525, %v613
        %v615 = vpop.f32.mrb[0].mxu0
        %616 = vdwg.mxu0
        %617 = vmatprep.subr.mxu0 0.0
        %v618 = vand.u32 %v166, 4294901760
        %v619 = vsub.f32 %v166, %v618
        %v620 = vand.u32 %v619, 4294901760
        %621 = vmatpush1.msra.mxu0 %v620
        %622 = vmatprep.subr.mxu0 0.0
        %v623 = vand.u32 %v167, 4294901760
        %v624 = vsub.f32 %v167, %v623
        %v625 = vand.u32 %v624, 4294901760
        %626 = vmatpush1.msra.mxu0 %v625
        %627 = vmatprep.subr.mxu0 0.0
        %v628 = vand.u32 %v168, 4294901760
        %v629 = vsub.f32 %v168, %v628
        %v630 = vand.u32 %v629, 4294901760
        %631 = vmatpush1.msra.mxu0 %v630
        %632 = vmatprep.subr.mxu0 0.0
        %v633 = vand.u32 %v169, 4294901760
        %v634 = vsub.f32 %v169, %v633
        %v635 = vand.u32 %v634, 4294901760
        %636 = vmatpush1.msra.mxu0 %v635
        %637 = vmatprep.subr.mxu0 0.0
        %v638 = vand.u32 %v170, 4294901760
        %v639 = vsub.f32 %v170, %v638
        %v640 = vand.u32 %v639, 4294901760
        %641 = vmatpush1.msra.mxu0 %v640
        %642 = vmatprep.subr.mxu0 0.0
        %v643 = vand.u32 %v171, 4294901760
        %v644 = vsub.f32 %v171, %v643
        %v645 = vand.u32 %v644, 4294901760
        %646 = vmatpush1.msra.mxu0 %v645
        %647 = vmatprep.subr.mxu0 0.0
        %v648 = vand.u32 %v172, 4294901760
        %v649 = vsub.f32 %v172, %v648
        %v650 = vand.u32 %v649, 4294901760
        %651 = vmatpush1.msra.mxu0 %v650
        %652 = vmatprep.subr.mxu0 0.0
        %v653 = vand.u32 %v173, 4294901760
        %v654 = vsub.f32 %v173, %v653
        %v655 = vand.u32 %v654, 4294901760
        %656 = vmatpush1.msra.mxu0 %v655
        %657 = vmatprep.subr.mxu0 0.0
        %v658 = vand.u32 %v174, 4294901760
        %v659 = vsub.f32 %v174, %v658
        %v660 = vand.u32 %v659, 4294901760
        %661 = vmatpush1.msra.mxu0 %v660
        %662 = vmatprep.subr.mxu0 0.0
        %v663 = vand.u32 %v175, 4294901760
        %v664 = vsub.f32 %v175, %v663
        %v665 = vand.u32 %v664, 4294901760
        %666 = vmatpush1.msra.mxu0 %v665
        %667 = vmatprep.subr.mxu0 0.0
        %v668 = vand.u32 %v176, 4294901760
        %v669 = vsub.f32 %v176, %v668
        %v670 = vand.u32 %v669, 4294901760
        %671 = vmatpush1.msra.mxu0 %v670
        %672 = vmatprep.subr.mxu0 0.0
        %v673 = vand.u32 %v177, 4294901760
        %v674 = vsub.f32 %v177, %v673
        %v675 = vand.u32 %v674, 4294901760
        %676 = vmatpush1.msra.mxu0 %v675
        %677 = vmatprep.subr.mxu0 0.0
        %v678 = vand.u32 %v178, 4294901760
        %v679 = vsub.f32 %v178, %v678
        %v680 = vand.u32 %v679, 4294901760
        %681 = vmatpush1.msra.mxu0 %v680
        %682 = vmatprep.subr.mxu0 0.0
        %v683 = vand.u32 %v179, 4294901760
        %v684 = vsub.f32 %v179, %v683
        %v685 = vand.u32 %v684, 4294901760
        %686 = vmatpush1.msra.mxu0 %v685
        %687 = vmatprep.subr.mxu0 0.0
        %v688 = vand.u32 %v180, 4294901760
        %v689 = vsub.f32 %v180, %v688
        %v690 = vand.u32 %v689, 4294901760
        %691 = vmatpush1.msra.mxu0 %v690
        %692 = vmatprep.subr.mxu0 0.0
        %v693 = vand.u32 %v181, 4294901760
        %v694 = vsub.f32 %v181, %v693
        %v695 = vand.u32 %v694, 4294901760
        %696 = vmatpush1.msra.mxu0 %v695
        %697 = vmatprep.subr.mxu0 0.0
        %698 = vmatpush1.msra.mxu0 0.0
        %699 = vmatprep.subr.mxu0 0.0
        %700 = vmatpush1.msra.mxu0 0.0
        %701 = vmatprep.subr.mxu0 0.0
        %702 = vmatpush1.msra.mxu0 0.0
        %703 = vmatprep.subr.mxu0 0.0
        %704 = vmatpush1.msra.mxu0 0.0
        %705 = vmatprep.subr.mxu0 0.0
        %706 = vmatpush1.msra.mxu0 0.0
        %707 = vmatprep.subr.mxu0 0.0
        %708 = vmatpush1.msra.mxu0 0.0
        %709 = vmatprep.subr.mxu0 0.0
        %710 = vmatpush1.msra.mxu0 0.0
        %711 = vmatprep.subr.mxu0 0.0
        %712 = vmatpush1.msra.mxu0 0.0
        %713 = vmatprep.subr.mxu0 0.0
        %714 = vmatpush1.msra.mxu0 0.0
        %715 = vmatprep.subr.mxu0 0.0
        %716 = vmatpush1.msra.mxu0 0.0
        %717 = vmatprep.subr.mxu0 0.0
        %718 = vmatpush1.msra.mxu0 0.0
        %719 = vmatprep.subr.mxu0 0.0
        %720 = vmatpush1.msra.mxu0 0.0
        %721 = vmatprep.subr.mxu0 0.0
        %722 = vmatpush1.msra.mxu0 0.0
        %723 = vmatprep.subr.mxu0 0.0
        %724 = vmatpush1.msra.mxu0 0.0
        %725 = vmatprep.subr.mxu0 0.0
        %726 = vmatpush1.msra.mxu0 0.0
        %727 = vmatprep.subr.mxu0 0.0
        %728 = vmatpush1.msra.mxu0 0.0
        %729 = vmatprep.mubr.f32.mxu0 0.0
        %v730 = vand.u32 %v165, 4294901760
        %731 = vmatmul.mubr.f32.gmra.mrb[0].mxu0 %v730
        %v732 = vpop.f32.mrb[0].mxu0
        %v733 = vadd.f32 %v614, %v732
        %v734 = vpop.f32.mrb[0].mxu0
        %735 = vdwg.mxu0
        %736 = vmatprep.subr.mxu0 0.0
        %v737 = vand.u32 %v166, 4294901760
        %738 = vmatpush1.msra.mxu0 %v737
        %739 = vmatprep.subr.mxu0 0.0
        %v740 = vand.u32 %v167, 4294901760
        %741 = vmatpush1.msra.mxu0 %v740
        %742 = vmatprep.subr.mxu0 0.0
        %v743 = vand.u32 %v168, 4294901760
        %744 = vmatpush1.msra.mxu0 %v743
        %745 = vmatprep.subr.mxu0 0.0
        %v746 = vand.u32 %v169, 4294901760
        %747 = vmatpush1.msra.mxu0 %v746
        %748 = vmatprep.subr.mxu0 0.0
        %v749 = vand.u32 %v170, 4294901760
        %750 = vmatpush1.msra.mxu0 %v749
        %751 = vmatprep.subr.mxu0 0.0
        %v752 = vand.u32 %v171, 4294901760
        %753 = vmatpush1.msra.mxu0 %v752
        %754 = vmatprep.subr.mxu0 0.0
        %v755 = vand.u32 %v172, 4294901760
        %756 = vmatpush1.msra.mxu0 %v755
        %757 = vmatprep.subr.mxu0 0.0
        %v758 = vand.u32 %v173, 4294901760
        %759 = vmatpush1.msra.mxu0 %v758
        %760 = vmatprep.subr.mxu0 0.0
        %v761 = vand.u32 %v174, 4294901760
        %762 = vmatpush1.msra.mxu0 %v761
        %763 = vmatprep.subr.mxu0 0.0
        %v764 = vand.u32 %v175, 4294901760
        %765 = vmatpush1.msra.mxu0 %v764
        %766 = vmatprep.subr.mxu0 0.0
        %v767 = vand.u32 %v176, 4294901760
        %768 = vmatpush1.msra.mxu0 %v767
        %769 = vmatprep.subr.mxu0 0.0
        %v770 = vand.u32 %v177, 4294901760
        %771 = vmatpush1.msra.mxu0 %v770
        %772 = vmatprep.subr.mxu0 0.0
        %v773 = vand.u32 %v178, 4294901760
        %774 = vmatpush1.msra.mxu0 %v773
        %775 = vmatprep.subr.mxu0 0.0
        %v776 = vand.u32 %v179, 4294901760
        %777 = vmatpush1.msra.mxu0 %v776
        %778 = vmatprep.subr.mxu0 0.0
        %v779 = vand.u32 %v180, 4294901760
        %780 = vmatpush1.msra.mxu0 %v779
        %781 = vmatprep.subr.mxu0 0.0
        %v782 = vand.u32 %v181, 4294901760
        %783 = vmatpush1.msra.mxu0 %v782
        %784 = vmatprep.subr.mxu0 0.0
        %785 = vmatpush1.msra.mxu0 0.0
        %786 = vmatprep.subr.mxu0 0.0
        %787 = vmatpush1.msra.mxu0 0.0
        %788 = vmatprep.subr.mxu0 0.0
        %789 = vmatpush1.msra.mxu0 0.0
        %790 = vmatprep.subr.mxu0 0.0
        %791 = vmatpush1.msra.mxu0 0.0
        %792 = vmatprep.subr.mxu0 0.0
        %793 = vmatpush1.msra.mxu0 0.0
        %794 = vmatprep.subr.mxu0 0.0
        %795 = vmatpush1.msra.mxu0 0.0
        %796 = vmatprep.subr.mxu0 0.0
        %797 = vmatpush1.msra.mxu0 0.0
        %798 = vmatprep.subr.mxu0 0.0
        %799 = vmatpush1.msra.mxu0 0.0
        %800 = vmatprep.subr.mxu0 0.0
        %801 = vmatpush1.msra.mxu0 0.0
        %802 = vmatprep.subr.mxu0 0.0
        %803 = vmatpush1.msra.mxu0 0.0
        %804 = vmatprep.subr.mxu0 0.0
        %805 = vmatpush1.msra.mxu0 0.0
        %806 = vmatprep.subr.mxu0 0.0
        %807 = vmatpush1.msra.mxu0 0.0
        %808 = vmatprep.subr.mxu0 0.0
        %809 = vmatpush1.msra.mxu0 0.0
        %810 = vmatprep.subr.mxu0 0.0
        %811 = vmatpush1.msra.mxu0 0.0
        %812 = vmatprep.subr.mxu0 0.0
        %813 = vmatpush1.msra.mxu0 0.0
        %814 = vmatprep.subr.mxu0 0.0
        %815 = vmatpush1.msra.mxu0 0.0
        %816 = vmatprep.mubr.f32.mxu0 0.0
        %v817 = vand.u32 %v165, 4294901760
        %818 = vmatmul.mubr.f32.gmra.mrb[0].mxu0 %v817
        %v819 = vpop.f32.mrb[0].mxu0
        %v820 = vadd.f32 %v733, %v819
        %v821 = vpop.f32.mrb[0].mxu0
        %822 = vdwg.mxu0
        %vm823 = vcmask 261120
        %824 = vst.msk [vmem:[%s148] sm:$0xff] %vm823, %v820
        %s825 = sand.u32 %s85, 1
        %s826 = scalar_lea.sflag [#allocation3], %s825
        %s827 = sand.u32 %s85, 1
        %s828 = smul.addr %s827, 8
        %s829 = scalar_lea.vmem [#allocation2], %s828
        // Predicated region
        $region29: #{unpool.1} parent=27 // pred_check
          %p830 = pneg %p95
        $region30: #{unpool.1} parent=27 // pred_check_branch
          %832 = sbr.rel (%p830) target = $region32
        $region31: #{unpool.1} parent=27 // pred_region
          %s834 = ssub.s32 128, 128
          %835 = vsyncadd %s826, %s834
          %s836 = sadd.s32 %s20, %s21
          %s837 = smul.addr %s836, 128
          %s838 = scalar_lea.hbm %s2, %s837
          %s840 = sshll.u32 %s829, 4
          %s841 = int_to_ptr.vmem [resolvable:$true] %s840
          %843 = dma.vmem_to_hbm [thread:$0]  %s841, 128, %s838, %s826
        $region32: #{unpool.1} parent=27 // pred_fallthru
          _
      $region28: #{unpool.1} parent=5 // pred_fallthru
        _
      %p844 = scmp.le.s32.totalorder 2, %s11
      // Predicated region
      $region33: #{unpool.1} parent=5 // pred_check
        %p845 = pneg %p844
      $region34: #{unpool.1} parent=5 // pred_check_branch
        %847 = sbr.rel (%p845) target = $region36
      $region35: #{unpool.1} parent=5 // pred_region
        %s848 = ssub.s32 %s11, 2
        // Predicated region
        $region37: #{unpool.1} parent=35 // pred_check
          %p849 = pneg %p101
        $region38: #{unpool.1} parent=35 // pred_check_branch
          %851 = sbr.rel (%p849) target = $region40
        $region39: #{unpool.1} parent=35 // pred_region
          %s852 = sand.u32 %s86, 1
          %s853 = scalar_lea.sflag [#allocation3], %s852
          %s854 = sand.u32 %s86, 1
          %s855 = smul.addr %s854, 8
          %s856 = scalar_lea.vmem [#allocation2], %s855
          %857 = dma.done %s853, 128
        $region40: #{unpool.1} parent=35 // pred_fallthru
          _
      $region36: #{unpool.1} parent=5 // pred_fallthru
        _
    $region6: #{unpool.1} parent=1 // loop_footer
      %s15 = sadd.s32 1, %s11
    $region7: #{unpool.1} parent=1 // loop_footer_branch
      %10 = sbr.rel target = $region3
    $region8: #{unpool.1} parent=1 // loop_exit
      _
    %858 = vsyncpa [#allocation3], 1
    %s859 = scalar_lea.sflag [#allocation3], 1
    %860 = vsyncpa %s859, 1

</llo_original>
